<compile_context>
chip_gen: v5e
topology: v5e:2x2
jax: 0.10.0
libtpu: 0.0.40
codegen_flags: <defaults>
</compile_context>

<pallas_src>
import jax
import jax.numpy as jnp
from jax.experimental import pallas as pl
from jax.experimental.pallas import tpu as pltpu

LANE = 128        # feature dims padded to multiples of this (lane-dense stores)
ROW_ALIGN = 16    # batch tiles rounded to this (bf16 sublane packing = 16 rows)


def _round_up(n, m):
    return ((n + m - 1) // m) * m


def _cdiv(a, b):
    return (a + b - 1) // b


def _use_bf16_activations():
    """bf16 tanh/activations only on chips with a bf16 VPU+EUP path (v6e, v7x)."""
    try:
        kind = jax.devices()[0].device_kind.lower()
    except Exception:
        return False
    return ("v6" in kind) or ("v7" in kind)


def make_mlp_kernel(act_dtype):
    """Fused 5-layer MLP over one (TB, in_pad) batch tile.

    MXU inputs are bf16 (weights stored bf16, activations carried in
    `act_dtype`); accumulation and bias-add stay f32; tanh runs in
    `act_dtype` (bf16 on v6e/v7x, f32 on v5e)."""

    def mlp_kernel(x_ref,
                   w1_ref, b1_ref, w2_ref, b2_ref, w3_ref, b3_ref,
                   w4_ref, b4_ref, w5_ref, b5_ref, o_ref):
        def layer(h, w_ref, b_ref, activate):
            y = jnp.dot(h.astype(jnp.bfloat16), w_ref[...],
                        preferred_element_type=jnp.float32) + b_ref[...]
            if not activate:
                return y
            return jnp.tanh(y.astype(act_dtype))

        h = x_ref[...]                        # (TB, in_pad) bf16
        h = layer(h, w1_ref, b1_ref, True)    # (TB, 128)
        h = layer(h, w2_ref, b2_ref, True)    # (TB, 128)
        h = layer(h, w3_ref, b3_ref, True)    # (TB, 256)
        h = layer(h, w4_ref, b4_ref, True)    # (TB, 512)
        o_ref[...] = layer(h, w5_ref, b5_ref, False).astype(o_ref.dtype)

    return mlp_kernel


def init_params(key, in_feat, actions):
    """PyTorch nn.Linear-style uniform(-1/sqrt(fan_in), 1/sqrt(fan_in)) init (f32)."""
    dims = [in_feat, 64, 128, 256, 512, actions]
    params = []
    for i in range(len(dims) - 1):
        fan_in, fan_out = dims[i], dims[i + 1]
        key, kw, kb = jax.random.split(key, 3)
        bound = 1.0 / jnp.sqrt(jnp.float32(fan_in))
        w = jax.random.uniform(kw, (fan_in, fan_out), jnp.float32,
                               minval=-bound, maxval=bound)
        b = jax.random.uniform(kb, (1, fan_out), jnp.float32,
                               minval=-bound, maxval=bound)
        params.append((w, b))
    return params


def prepare_padded_params(params):
    """Pad every weight/bias to lane-dense (multiple-of-128) shapes ONCE.
    Weights stored bf16 (MXU-native), biases kept f32.  Zero padding is exact:
    padded input columns / hidden units stay 0 through tanh(0)=0 and zero
    weight rows, so unpadded outputs are unchanged."""
    padded = []
    for w, b in params:
        k, n = w.shape
        kp, np_ = _round_up(k, LANE), _round_up(n, LANE)
        w_p = jnp.pad(w, ((0, kp - k), (0, np_ - n))).astype(jnp.bfloat16)
        b_p = jnp.pad(b, ((0, 0), (0, np_ - n))).astype(jnp.float32)
        padded.append((w_p, b_p))
    return padded


def _pick_batch_tiling(B, max_batch_tile):
    """Balanced batch tiles; force >=2 tiles (megacore sharding on v7x) when
    each tile still keeps >=256 rows for the narrow K=128/N=128 matmuls."""
    n_tiles = max(1, _cdiv(B, max_batch_tile))
    if n_tiles == 1 and B >= 512:
        n_tiles = 2
    TB = _round_up(_cdiv(B, n_tiles), ROW_ALIGN)
    Bp = TB * n_tiles
    return TB, Bp


def dqn_forward(x, padded_params, actions, *, max_batch_tile=None):
    """x: (B, in_feat) f32.  padded_params: output of prepare_padded_params."""
    B, in_feat = x.shape
    in_pad = padded_params[0][0].shape[0]
    out_pad = padded_params[-1][0].shape[1]

    use_bf16_act = _use_bf16_activations()
    act_dtype = jnp.bfloat16 if use_bf16_act else jnp.float32
    if max_batch_tile is None:
        # f32 intermediates (v5e path) are twice the size -> smaller tile cap.
        max_batch_tile = 2048 if use_bf16_act else 1024

    TB, Bp = _pick_batch_tiling(B, max_batch_tile)

    # Pre-cast the padded input to bf16: halves per-tile x DMA and removes the
    # first in-kernel VPU cast pass.
    x_p = jnp.pad(x, ((0, Bp - B), (0, in_pad - in_feat))).astype(jnp.bfloat16)

    flat_args = [x_p]
    for w, b in padded_params:
        flat_args.extend([w, b])

    # x / out tiled over the batch grid; weights & biases use constant
    # index_maps so they stay VMEM-resident across batch tiles (~0.5 MiB).
    in_specs = [pl.BlockSpec((TB, in_pad), lambda i: (i, 0))]
    for w, b in padded_params:
        in_specs.append(pl.BlockSpec(w.shape, lambda i: (0, 0)))
        in_specs.append(pl.BlockSpec(b.shape, lambda i: (0, 0)))
    out_spec = pl.BlockSpec((TB, out_pad), lambda i: (i, 0))

    flops = 2 * Bp * sum(w.shape[0] * w.shape[1] for w, _ in padded_params)
    transcendentals = Bp * sum(w.shape[1] for w, _ in padded_params[:-1])
    weight_bytes = sum(w.size * 2 + b.size * 4 for w, b in padded_params)
    bytes_accessed = weight_bytes + Bp * (in_pad + out_pad) * 2   # bf16 x / out

    # Scoped-VMEM budget: footprint-based with headroom, clamped to 48 MiB
    # (safe on all generations; v5e's default scoped limit is only 16 MiB).
    act_bytes = 2 if use_bf16_act else 4
    est = (2 * weight_bytes                          # double-buffered params
           + 2 * TB * (in_pad + out_pad) * 2         # double-buffered bf16 x / out
           + 4 * TB * 512 * act_bytes                # live activations
           + 2 * TB * 512 * 4)                       # f32 accumulators
    vmem_limit = int(min(max(2 * est, 32 << 20), 48 << 20))

    out = pl.pallas_call(
        make_mlp_kernel(act_dtype),
        out_shape=jax.ShapeDtypeStruct((Bp, out_pad), jnp.bfloat16),
        grid=(Bp // TB,),
        in_specs=in_specs,
        out_specs=out_spec,
        compiler_params=pltpu.CompilerParams(
            dimension_semantics=("parallel",),
            vmem_limit_bytes=vmem_limit),
        cost_estimate=pl.CostEstimate(
            flops=flops,
            transcendentals=transcendentals,
            bytes_accessed=bytes_accessed),
    )(*flat_args)

    # TODO(synk): bf16 Q-values can flip argmax for near-tied actions; switch
    # out_shape back to f32 if exact tie-breaking vs an f32 policy matters.
    return out[:B, :actions].astype(jnp.float32)


def reference_forward_matched(x, padded_params, actions):
    """Plain-JAX reference replicating the kernel's exact arithmetic
    (bf16 MXU inputs, f32 accum, generation-gated activation dtype, bf16 out)."""
    use_bf16_act = _use_bf16_activations()
    act_dtype = jnp.bfloat16 if use_bf16_act else jnp.float32
    in_pad = padded_params[0][0].shape[0]
    h = jnp.pad(x, ((0, 0), (0, in_pad - x.shape[1]))).astype(jnp.bfloat16)
    n = len(padded_params)
    y = None
    for i, (w, b) in enumerate(padded_params):
        y = jnp.dot(h.astype(jnp.bfloat16), w,
                    preferred_element_type=jnp.float32) + b
        if i < n - 1:
            h = jnp.tanh(y.astype(act_dtype))
    return y.astype(jnp.bfloat16)[:, :actions].astype(jnp.float32)


def reference_forward_f32(x, params):
    """Pure-f32 reference on the original (unpadded) parameters."""
    h = x
    for i, (w, b) in enumerate(params):
        h = h @ w + b
        if i < len(params) - 1:
            h = jnp.tanh(h)
    return h


if __name__ == "__main__":
    key = jax.random.PRNGKey(0)
    batch = 2
    in_feat = 32   # flattened observation size (synthetic)
    actions = 6    # number of game actions (synthetic)
    # NOTE: at B=2 the kernel is pure fixed overhead; real DQN rollouts should
    # batch many env states (B >= 512 also engages both v7x TensorCores).

    key, kx = jax.random.split(key)
    x = jax.random.normal(kx, (batch, in_feat), jnp.float32)
    params = init_params(key, in_feat, actions)
    padded_params = prepare_padded_params(params)   # pad/cast once, reuse per call

    q_vals = dqn_forward(x, padded_params, actions)
    q_vals = jax.block_until_ready(q_vals)
    assert q_vals.shape == (batch, actions)

    # arithmetic-matched check (same bf16-fed / f32-accum / gated-tanh path)
    ref_matched = reference_forward_matched(x, padded_params, actions)
    assert jnp.allclose(q_vals, ref_matched, atol=2e-2, rtol=2e-2)

    # loose check against the pure f32 reference (bf16 quantization of
    # weights / activations / output)
    ref_f32 = reference_forward_f32(x, params)
    assert jnp.allclose(q_vals, ref_f32, atol=6e-2, rtol=6e-2)

    # equivalent of Network.act(): greedy action per batch element
    _ = jnp.argmax(q_vals, axis=1)

    print("KERNEL_OK")
</pallas_src>

<mosaic_0001>
module attributes {stable_mosaic.version = 11 : i64} {
  func.func @mlp_kernel(%arg0: i32, %arg1: memref<16x128xbf16, #tpu.memory_space<vmem>>, %arg2: memref<128x128xbf16, #tpu.memory_space<vmem>>, %arg3: memref<1x128xf32, #tpu.memory_space<vmem>>, %arg4: memref<128x128xbf16, #tpu.memory_space<vmem>>, %arg5: memref<1x128xf32, #tpu.memory_space<vmem>>, %arg6: memref<128x256xbf16, #tpu.memory_space<vmem>>, %arg7: memref<1x256xf32, #tpu.memory_space<vmem>>, %arg8: memref<256x512xbf16, #tpu.memory_space<vmem>>, %arg9: memref<1x512xf32, #tpu.memory_space<vmem>>, %arg10: memref<512x128xbf16, #tpu.memory_space<vmem>>, %arg11: memref<1x128xf32, #tpu.memory_space<vmem>>, %arg12: memref<16x128xbf16, #tpu.memory_space<vmem>>) attributes {dimension_semantics = [#tpu.dimension_semantics<parallel>], iteration_bounds = array<i64: 1>, scalar_prefetch = 0 : i64, scratch_operands = 0 : i64, tpu.core_type = #tpu.core_type<tc>, window_params = [{transform_indices = @transform_0, window_bounds = array<i64: 16, 128>}, {pipeline_mode = #tpu.pipeline_mode<synchronous>, transform_indices = @transform_1, window_bounds = array<i64: 128, 128>}, {pipeline_mode = #tpu.pipeline_mode<synchronous>, transform_indices = @transform_2, window_bounds = array<i64: 1, 128>}, {pipeline_mode = #tpu.pipeline_mode<synchronous>, transform_indices = @transform_3, window_bounds = array<i64: 128, 128>}, {pipeline_mode = #tpu.pipeline_mode<synchronous>, transform_indices = @transform_4, window_bounds = array<i64: 1, 128>}, {pipeline_mode = #tpu.pipeline_mode<synchronous>, transform_indices = @transform_5, window_bounds = array<i64: 128, 256>}, {pipeline_mode = #tpu.pipeline_mode<synchronous>, transform_indices = @transform_6, window_bounds = array<i64: 1, 256>}, {pipeline_mode = #tpu.pipeline_mode<synchronous>, transform_indices = @transform_7, window_bounds = array<i64: 256, 512>}, {pipeline_mode = #tpu.pipeline_mode<synchronous>, transform_indices = @transform_8, window_bounds = array<i64: 1, 512>}, {pipeline_mode = #tpu.pipeline_mode<synchronous>, transform_indices = @transform_9, window_bounds = array<i64: 512, 128>}, {pipeline_mode = #tpu.pipeline_mode<synchronous>, transform_indices = @transform_10, window_bounds = array<i64: 1, 128>}, {transform_indices = @transform_11, window_bounds = array<i64: 16, 128>}]} {
    %c0 = arith.constant 0 : index
    %c0_0 = arith.constant 0 : index
    %0 = vector.load %arg1[%c0, %c0_0] : memref<16x128xbf16, #tpu.memory_space<vmem>>, vector<16x128xbf16>
    %c0_1 = arith.constant 0 : index
    %c0_2 = arith.constant 0 : index
    %1 = vector.load %arg2[%c0_1, %c0_2] : memref<128x128xbf16, #tpu.memory_space<vmem>>, vector<128x128xbf16>
    %cst = arith.constant dense<0.000000e+00> : vector<16x128xf32>
    %2 = tpu.matmul %0, %1, %cst {dimension_numbers = #tpu.dot_dimension_numbers<[1], [0], [0], [1], [0, 0, 1, 1], [], []>} : vector<16x128xbf16>, vector<128x128xbf16>, vector<16x128xf32> -> vector<16x128xf32>
    %c0_3 = arith.constant 0 : index
    %c0_4 = arith.constant 0 : index
    %3 = vector.load %arg3[%c0_3, %c0_4] : memref<1x128xf32, #tpu.memory_space<vmem>>, vector<1x128xf32>
    %4 = vector.broadcast %3 : vector<1x128xf32> to vector<16x128xf32>
    %5 = arith.addf %2, %4 : vector<16x128xf32>
    %6 = math.tanh %5 : vector<16x128xf32>
    %7 = arith.truncf %6 : vector<16x128xf32> to vector<16x128xbf16>
    %c0_5 = arith.constant 0 : index
    %c0_6 = arith.constant 0 : index
    %8 = vector.load %arg4[%c0_5, %c0_6] : memref<128x128xbf16, #tpu.memory_space<vmem>>, vector<128x128xbf16>
    %cst_7 = arith.constant dense<0.000000e+00> : vector<16x128xf32>
    %9 = tpu.matmul %7, %8, %cst_7 {dimension_numbers = #tpu.dot_dimension_numbers<[1], [0], [0], [1], [0, 0, 1, 1], [], []>} : vector<16x128xbf16>, vector<128x128xbf16>, vector<16x128xf32> -> vector<16x128xf32>
    %c0_8 = arith.constant 0 : index
    %c0_9 = arith.constant 0 : index
    %10 = vector.load %arg5[%c0_8, %c0_9] : memref<1x128xf32, #tpu.memory_space<vmem>>, vector<1x128xf32>
    %11 = vector.broadcast %10 : vector<1x128xf32> to vector<16x128xf32>
    %12 = arith.addf %9, %11 : vector<16x128xf32>
    %13 = math.tanh %12 : vector<16x128xf32>
    %14 = arith.truncf %13 : vector<16x128xf32> to vector<16x128xbf16>
    %c0_10 = arith.constant 0 : index
    %c0_11 = arith.constant 0 : index
    %15 = vector.load %arg6[%c0_10, %c0_11] : memref<128x256xbf16, #tpu.memory_space<vmem>>, vector<128x256xbf16>
    %cst_12 = arith.constant dense<0.000000e+00> : vector<16x256xf32>
    %16 = tpu.matmul %14, %15, %cst_12 {dimension_numbers = #tpu.dot_dimension_numbers<[1], [0], [0], [1], [0, 0, 1, 1], [], []>} : vector<16x128xbf16>, vector<128x256xbf16>, vector<16x256xf32> -> vector<16x256xf32>
    %c0_13 = arith.constant 0 : index
    %c0_14 = arith.constant 0 : index
    %17 = vector.load %arg7[%c0_13, %c0_14] : memref<1x256xf32, #tpu.memory_space<vmem>>, vector<1x256xf32>
    %18 = vector.broadcast %17 : vector<1x256xf32> to vector<16x256xf32>
    %19 = arith.addf %16, %18 : vector<16x256xf32>
    %20 = math.tanh %19 : vector<16x256xf32>
    %21 = arith.truncf %20 : vector<16x256xf32> to vector<16x256xbf16>
    %c0_15 = arith.constant 0 : index
    %c0_16 = arith.constant 0 : index
    %22 = vector.load %arg8[%c0_15, %c0_16] : memref<256x512xbf16, #tpu.memory_space<vmem>>, vector<256x512xbf16>
    %cst_17 = arith.constant dense<0.000000e+00> : vector<16x512xf32>
    %23 = tpu.matmul %21, %22, %cst_17 {dimension_numbers = #tpu.dot_dimension_numbers<[1], [0], [0], [1], [0, 0, 1, 1], [], []>} : vector<16x256xbf16>, vector<256x512xbf16>, vector<16x512xf32> -> vector<16x512xf32>
    %c0_18 = arith.constant 0 : index
    %c0_19 = arith.constant 0 : index
    %24 = vector.load %arg9[%c0_18, %c0_19] : memref<1x512xf32, #tpu.memory_space<vmem>>, vector<1x512xf32>
    %25 = vector.broadcast %24 : vector<1x512xf32> to vector<16x512xf32>
    %26 = arith.addf %23, %25 : vector<16x512xf32>
    %27 = math.tanh %26 : vector<16x512xf32>
    %28 = arith.truncf %27 : vector<16x512xf32> to vector<16x512xbf16>
    %c0_20 = arith.constant 0 : index
    %c0_21 = arith.constant 0 : index
    %29 = vector.load %arg10[%c0_20, %c0_21] : memref<512x128xbf16, #tpu.memory_space<vmem>>, vector<512x128xbf16>
    %cst_22 = arith.constant dense<0.000000e+00> : vector<16x128xf32>
    %30 = tpu.matmul %28, %29, %cst_22 {dimension_numbers = #tpu.dot_dimension_numbers<[1], [0], [0], [1], [0, 0, 1, 1], [], []>} : vector<16x512xbf16>, vector<512x128xbf16>, vector<16x128xf32> -> vector<16x128xf32>
    %c0_23 = arith.constant 0 : index
    %c0_24 = arith.constant 0 : index
    %31 = vector.load %arg11[%c0_23, %c0_24] : memref<1x128xf32, #tpu.memory_space<vmem>>, vector<1x128xf32>
    %32 = vector.broadcast %31 : vector<1x128xf32> to vector<16x128xf32>
    %33 = arith.addf %30, %32 : vector<16x128xf32>
    %34 = arith.truncf %33 : vector<16x128xf32> to vector<16x128xbf16>
    %c0_25 = arith.constant 0 : index
    %c0_26 = arith.constant 0 : index
    %35 = vector.load %arg12[%c0_25, %c0_26] : memref<16x128xbf16, #tpu.memory_space<vmem>>, vector<16x128xbf16>
    tpu.vector_store %arg12[%c0_25, %c0_26], %34 {strides = array<i32>} : memref<16x128xbf16, #tpu.memory_space<vmem>>, vector<16x128xbf16>,
    return
  }
  func.func @transform_0(%arg0: i32) -> (i32, i32) {
    %c0_i32 = arith.constant 0 : i32
    %c0_i32_0 = arith.constant 0 : i32
    return %arg0, %c0_i32 : i32, i32
  }
  func.func @transform_1(%arg0: i32) -> (i32, i32) {
    %c0_i32 = arith.constant 0 : i32
    %c0_i32_0 = arith.constant 0 : i32
    %c0_i32_1 = arith.constant 0 : i32
    return %c0_i32, %c0_i32_0 : i32, i32
  }
  func.func @transform_2(%arg0: i32) -> (i32, i32) {
    %c0_i32 = arith.constant 0 : i32
    %c0_i32_0 = arith.constant 0 : i32
    %c0_i32_1 = arith.constant 0 : i32
    return %c0_i32, %c0_i32_0 : i32, i32
  }
  func.func @transform_3(%arg0: i32) -> (i32, i32) {
    %c0_i32 = arith.constant 0 : i32
    %c0_i32_0 = arith.constant 0 : i32
    %c0_i32_1 = arith.constant 0 : i32
    return %c0_i32, %c0_i32_0 : i32, i32
  }
  func.func @transform_4(%arg0: i32) -> (i32, i32) {
    %c0_i32 = arith.constant 0 : i32
    %c0_i32_0 = arith.constant 0 : i32
    %c0_i32_1 = arith.constant 0 : i32
    return %c0_i32, %c0_i32_0 : i32, i32
  }
  func.func @transform_5(%arg0: i32) -> (i32, i32) {
    %c0_i32 = arith.constant 0 : i32
    %c0_i32_0 = arith.constant 0 : i32
    %c0_i32_1 = arith.constant 0 : i32
    return %c0_i32, %c0_i32_0 : i32, i32
  }
  func.func @transform_6(%arg0: i32) -> (i32, i32) {
    %c0_i32 = arith.constant 0 : i32
    %c0_i32_0 = arith.constant 0 : i32
    %c0_i32_1 = arith.constant 0 : i32
    return %c0_i32, %c0_i32_0 : i32, i32
  }
  func.func @transform_7(%arg0: i32) -> (i32, i32) {
    %c0_i32 = arith.constant 0 : i32
    %c0_i32_0 = arith.constant 0 : i32
    %c0_i32_1 = arith.constant 0 : i32
    return %c0_i32, %c0_i32_0 : i32, i32
  }
  func.func @transform_8(%arg0: i32) -> (i32, i32) {
    %c0_i32 = arith.constant 0 : i32
    %c0_i32_0 = arith.constant 0 : i32
    %c0_i32_1 = arith.constant 0 : i32
    return %c0_i32, %c0_i32_0 : i32, i32
  }
  func.func @transform_9(%arg0: i32) -> (i32, i32) {
    %c0_i32 = arith.constant 0 : i32
    %c0_i32_0 = arith.constant 0 : i32
    %c0_i32_1 = arith.constant 0 : i32
    return %c0_i32, %c0_i32_0 : i32, i32
  }
  func.func @transform_10(%arg0: i32) -> (i32, i32) {
    %c0_i32 = arith.constant 0 : i32
    %c0_i32_0 = arith.constant 0 : i32
    %c0_i32_1 = arith.constant 0 : i32
    return %c0_i32, %c0_i32_0 : i32, i32
  }
  func.func @transform_11(%arg0: i32) -> (i32, i32) {
    %c0_i32 = arith.constant 0 : i32
    %c0_i32_0 = arith.constant 0 : i32
    return %arg0, %c0_i32 : i32, i32
  }
}

</mosaic_0001>

<llo_original>
// kernel: tpu_custom_call.1
$region0: #{tpu_custom_call.1}
  #allocation0 [shape = 'u32[]', space=smem, size = 0x4, offset = 0x4, fixed_abs, tag = 'smem constant byte address 0x4 - core index']
  #allocation1 [shape = 'u32[72,128]{1,0:T(1,128)}', space=vmem, size = 0x9000, scoped, tag = 'internal scratch']
  %s0 = inlined_call_operand.hbm [shape: bf16[16,128], index: 0, kind: input, shape index: {}]
  %s1 = inlined_call_operand.hbm [shape: bf16[128,128], index: 1, kind: input, shape index: {}]
  %s2 = inlined_call_operand.vmem [shape: f32[1,128], index: 2, kind: input, shape index: {}]
  %s3 = inlined_call_operand.hbm [shape: bf16[128,128], index: 3, kind: input, shape index: {}]
  %s4 = inlined_call_operand.hbm [shape: f32[1,128], index: 4, kind: input, shape index: {}]
  %s5 = inlined_call_operand.hbm [shape: bf16[128,256], index: 5, kind: input, shape index: {}]
  %s6 = inlined_call_operand.vmem [shape: f32[1,256], index: 6, kind: input, shape index: {}]
  %s7 = inlined_call_operand.hbm [shape: bf16[256,512], index: 7, kind: input, shape index: {}]
  %s8 = inlined_call_operand.vmem [shape: f32[1,512], index: 8, kind: input, shape index: {}]
  %s9 = inlined_call_operand.hbm [shape: bf16[512,128], index: 9, kind: input, shape index: {}]
  %s10 = inlined_call_operand.vmem [shape: f32[1,128], index: 10, kind: input, shape index: {}]
  %s11 = inlined_call_operand.hbm [shape: bf16[16,128], index: 11, kind: output, shape index: {}]
  %s12 = sld [smem:[#allocation0]]
  $region82: #{tpu_custom_call.1} parent=0
    _
  %s14 = ssub.s32 1, %s12
  %s15 = scalar_select 0, %s14, %s12
  $region1: #{tpu_custom_call.1} parent=0
    #allocation2 [shape = 'u8[4096]{0}', space=vmem, size = 0x1000, scoped, tag = 'input window, operand 0, single buffered']
    #allocation3 [shape = 's32[1]{0}', space=sflag, size = 0x4, scoped, tag = 'scoped memory for tpu_custom_call.1']
    #allocation4 [shape = 's32[1]{0}', space=sflag, size = 0x4, scoped, tag = 'scoped memory for tpu_custom_call.1']
    #allocation5 [shape = 'u8[32768]{0}', space=vmem, size = 0x8000, scoped, tag = 'input window, operand 1, single buffered']
    #allocation6 [shape = 's32[1]{0}', space=sflag, size = 0x4, scoped, tag = 'scoped memory for tpu_custom_call.1']
    #allocation7 [shape = 'u8[32768]{0}', space=vmem, size = 0x8000, scoped, tag = 'input window, operand 3, single buffered']
    #allocation8 [shape = 'u8[512]{0}', space=vmem, size = 0x400, scoped, tag = 'input window, operand 4, single buffered']
    #allocation9 [shape = 's32[1]{0}', space=sflag, size = 0x4, scoped, tag = 'scoped memory for tpu_custom_call.1']
    #allocation10 [shape = 'u8[65536]{0}', space=vmem, size = 0x10000, scoped, tag = 'input window, operand 5, single buffered']
    #allocation11 [shape = 'u8[262144]{0}', space=vmem, size = 0x40000, scoped, tag = 'input window, operand 7, single buffered']
    #allocation12 [shape = 's32[1]{0}', space=sflag, size = 0x4, scoped, tag = 'scoped memory for tpu_custom_call.1']
    #allocation13 [shape = 'u8[131072]{0}', space=vmem, size = 0x20000, scoped, tag = 'input window, operand 9, single buffered']
    #allocation14 [shape = 'u8[4096]{0}', space=vmem, size = 0x1000, scoped, tag = 'output window, operand 0, single buffered']
    %16 = vsyncpa [#allocation3], 0
    %17 = vsyncpa [#allocation6], 0
    %18 = vsyncpa [#allocation9], 0
    %19 = vsyncpa [#allocation12], 0
    %20 = vsyncpa [#allocation4], 0
    // Predicated region
    $region2: #{tpu_custom_call.1} parent=1 // pred_check
      _
    $region3: #{tpu_custom_call.1} parent=1 // pred_check_branch
      %22 = sbr.rel (0) target = $region5
    $region4: #{tpu_custom_call.1} parent=1 // pred_region
      %24 = vsyncadd [#allocation3], 0
      %s25 = sshll.u32 %s0, 4
      %s26 = int_to_ptr.hbm [resolvable:$true] %s25
      %s27 = sshll.u32 [#allocation2], 4
      %s28 = int_to_ptr.vmem [resolvable:$true] %s27
      %33 = dma.hbm_to_vmem [thread:$0]  %s26, 128, %s28, [#allocation3], 64, 64, 4
    $region5: #{tpu_custom_call.1} parent=1 // pred_fallthru
      _
    // Predicated region
    $region6: #{tpu_custom_call.1} parent=1 // pred_check
      _
    $region7: #{tpu_custom_call.1} parent=1 // pred_check_branch
      %35 = sbr.rel (0) target = $region9
    $region8: #{tpu_custom_call.1} parent=1 // pred_region
      %37 = vsyncadd [#allocation6], 0
      %s38 = sshll.u32 %s1, 4
      %s39 = int_to_ptr.hbm [resolvable:$true] %s38
      %s40 = sshll.u32 [#allocation5], 4
      %s41 = int_to_ptr.vmem [resolvable:$true] %s40
      %46 = dma.hbm_to_vmem [thread:$0]  %s39, 1024, %s41, [#allocation6], 64, 64, 4
    $region9: #{tpu_custom_call.1} parent=1 // pred_fallthru
      _
    // Predicated region
    $region10: #{tpu_custom_call.1} parent=1 // pred_check
      _
    $region11: #{tpu_custom_call.1} parent=1 // pred_check_branch
      %48 = sbr.rel (0) target = $region13
    $region12: #{tpu_custom_call.1} parent=1 // pred_region
      _
    $region13: #{tpu_custom_call.1} parent=1 // pred_fallthru
      _
    // Predicated region
    $region14: #{tpu_custom_call.1} parent=1 // pred_check
      _
    $region15: #{tpu_custom_call.1} parent=1 // pred_check_branch
      %50 = sbr.rel (0) target = $region17
    $region16: #{tpu_custom_call.1} parent=1 // pred_region
      %52 = vsyncadd [#allocation6], 0
      %s53 = sshll.u32 %s3, 4
      %s54 = int_to_ptr.hbm [resolvable:$true] %s53
      %s55 = sshll.u32 [#allocation7], 4
      %s56 = int_to_ptr.vmem [resolvable:$true] %s55
      %61 = dma.hbm_to_vmem [thread:$0]  %s54, 1024, %s56, [#allocation6], 64, 64, 4
    $region17: #{tpu_custom_call.1} parent=1 // pred_fallthru
      _
    // Predicated region
    $region18: #{tpu_custom_call.1} parent=1 // pred_check
      _
    $region19: #{tpu_custom_call.1} parent=1 // pred_check_branch
      %63 = sbr.rel (0) target = $region21
    $region20: #{tpu_custom_call.1} parent=1 // pred_region
      %65 = vsyncadd [#allocation9], 0
      %s67 = sshll.u32 %s4, 4
      %s68 = int_to_ptr.hbm [resolvable:$true] %s67
      %s69 = sshll.u32 [#allocation8], 4
      %s70 = int_to_ptr.vmem [resolvable:$true] %s69
      %72 = dma.hbm_to_vmem [thread:$0]  %s68, 16, %s70, [#allocation9]
    $region21: #{tpu_custom_call.1} parent=1 // pred_fallthru
      _
    // Predicated region
    $region22: #{tpu_custom_call.1} parent=1 // pred_check
      _
    $region23: #{tpu_custom_call.1} parent=1 // pred_check_branch
      %74 = sbr.rel (0) target = $region25
    $region24: #{tpu_custom_call.1} parent=1 // pred_region
      %76 = vsyncadd [#allocation9], 0
      %s77 = sshll.u32 %s5, 4
      %s78 = int_to_ptr.hbm [resolvable:$true] %s77
      %s79 = sshll.u32 [#allocation10], 4
      %s80 = int_to_ptr.vmem [resolvable:$true] %s79
      %85 = dma.hbm_to_vmem [thread:$0]  %s78, 2048, %s80, [#allocation9], 128, 128, 8
    $region25: #{tpu_custom_call.1} parent=1 // pred_fallthru
      _
    // Predicated region
    $region26: #{tpu_custom_call.1} parent=1 // pred_check
      _
    $region27: #{tpu_custom_call.1} parent=1 // pred_check_branch
      %87 = sbr.rel (0) target = $region29
    $region28: #{tpu_custom_call.1} parent=1 // pred_region
      _
    $region29: #{tpu_custom_call.1} parent=1 // pred_fallthru
      _
    // Predicated region
    $region30: #{tpu_custom_call.1} parent=1 // pred_check
      _
    $region31: #{tpu_custom_call.1} parent=1 // pred_check_branch
      %89 = sbr.rel (0) target = $region33
    $region32: #{tpu_custom_call.1} parent=1 // pred_region
      %91 = vsyncadd [#allocation12], 0
      %s92 = sshll.u32 %s7, 4
      %s93 = int_to_ptr.hbm [resolvable:$true] %s92
      %s94 = sshll.u32 [#allocation11], 4
      %s95 = int_to_ptr.vmem [resolvable:$true] %s94
      %100 = dma.hbm_to_vmem [thread:$0]  %s93, 8192, %s95, [#allocation12], 256, 256, 16
    $region33: #{tpu_custom_call.1} parent=1 // pred_fallthru
      _
    // Predicated region
    $region34: #{tpu_custom_call.1} parent=1 // pred_check
      _
    $region35: #{tpu_custom_call.1} parent=1 // pred_check_branch
      %102 = sbr.rel (0) target = $region37
    $region36: #{tpu_custom_call.1} parent=1 // pred_region
      _
    $region37: #{tpu_custom_call.1} parent=1 // pred_fallthru
      _
    // Predicated region
    $region38: #{tpu_custom_call.1} parent=1 // pred_check
      _
    $region39: #{tpu_custom_call.1} parent=1 // pred_check_branch
      %104 = sbr.rel (0) target = $region41
    $region40: #{tpu_custom_call.1} parent=1 // pred_region
      %106 = vsyncadd [#allocation12], 0
      %s107 = sshll.u32 %s9, 4
      %s108 = int_to_ptr.hbm [resolvable:$true] %s107
      %s109 = sshll.u32 [#allocation13], 4
      %s110 = int_to_ptr.vmem [resolvable:$true] %s109
      %115 = dma.hbm_to_vmem [thread:$0]  %s108, 4096, %s110, [#allocation12], 64, 64, 4
    $region41: #{tpu_custom_call.1} parent=1 // pred_fallthru
      _
    // Predicated region
    $region42: #{tpu_custom_call.1} parent=1 // pred_check
      _
    $region43: #{tpu_custom_call.1} parent=1 // pred_check_branch
      %117 = sbr.rel (0) target = $region45
    $region44: #{tpu_custom_call.1} parent=1 // pred_region
      _
    $region45: #{tpu_custom_call.1} parent=1 // pred_fallthru
      _
    // Predicated region
    $region46: #{tpu_custom_call.1} parent=1 // pred_check
      _
    $region47: #{tpu_custom_call.1} parent=1 // pred_check_branch
      %119 = sbr.rel (0) target = $region49
    $region48: #{tpu_custom_call.1} parent=1 // pred_region
      %121 = dma.done [#allocation3], 128
    $region49: #{tpu_custom_call.1} parent=1 // pred_fallthru
      _
    // Predicated region
    $region50: #{tpu_custom_call.1} parent=1 // pred_check
      _
    $region51: #{tpu_custom_call.1} parent=1 // pred_check_branch
      %123 = sbr.rel (0) target = $region53
    $region52: #{tpu_custom_call.1} parent=1 // pred_region
      %125 = dma.done [#allocation6], 1024
    $region53: #{tpu_custom_call.1} parent=1 // pred_fallthru
      _
    // Predicated region
    $region54: #{tpu_custom_call.1} parent=1 // pred_check
      _
    $region55: #{tpu_custom_call.1} parent=1 // pred_check_branch
      %127 = sbr.rel (0) target = $region57
    $region56: #{tpu_custom_call.1} parent=1 // pred_region
      %129 = dma.done [#allocation6], 1024
    $region57: #{tpu_custom_call.1} parent=1 // pred_fallthru
      _
    // Predicated region
    $region58: #{tpu_custom_call.1} parent=1 // pred_check
      _
    $region59: #{tpu_custom_call.1} parent=1 // pred_check_branch
      %131 = sbr.rel (0) target = $region61
    $region60: #{tpu_custom_call.1} parent=1 // pred_region
      %133 = dma.done [#allocation9], 16
    $region61: #{tpu_custom_call.1} parent=1 // pred_fallthru
      _
    // Predicated region
    $region62: #{tpu_custom_call.1} parent=1 // pred_check
      _
    $region63: #{tpu_custom_call.1} parent=1 // pred_check_branch
      %135 = sbr.rel (0) target = $region65
    $region64: #{tpu_custom_call.1} parent=1 // pred_region
      %137 = dma.done [#allocation9], 2048
    $region65: #{tpu_custom_call.1} parent=1 // pred_fallthru
      _
    // Predicated region
    $region66: #{tpu_custom_call.1} parent=1 // pred_check
      _
    $region67: #{tpu_custom_call.1} parent=1 // pred_check_branch
      %139 = sbr.rel (0) target = $region69
    $region68: #{tpu_custom_call.1} parent=1 // pred_region
      %141 = dma.done [#allocation12], 8192
    $region69: #{tpu_custom_call.1} parent=1 // pred_fallthru
      _
    // Predicated region
    $region70: #{tpu_custom_call.1} parent=1 // pred_check
      _
    $region71: #{tpu_custom_call.1} parent=1 // pred_check_branch
      %143 = sbr.rel (0) target = $region73
    $region72: #{tpu_custom_call.1} parent=1 // pred_region
      %145 = dma.done [#allocation12], 4096
    $region73: #{tpu_custom_call.1} parent=1 // pred_fallthru
      _
    %v146 = vld [vmem:[#allocation2] sm:$0xf]
    %v147 = vld [vmem:[#allocation2 + $0x4] sm:$0xf]
    %v148 = vld [vmem:[#allocation5] sm:$0xf]
    %v149 = vld [vmem:[#allocation5 + $0x4] sm:$0xf]
    %v150 = vld [vmem:[#allocation5 + $0x8] sm:$0xf]
    %v151 = vld [vmem:[#allocation5 + $0xc] sm:$0xf]
    %v152 = vld [vmem:[#allocation5 + $0x10] sm:$0xf]
    %v153 = vld [vmem:[#allocation5 + $0x14] sm:$0xf]
    %v154 = vld [vmem:[#allocation5 + $0x18] sm:$0xf]
    %v155 = vld [vmem:[#allocation5 + $0x1c] sm:$0xf]
    %v156 = vld [vmem:[#allocation5 + $0x20] sm:$0xf]
    %v157 = vld [vmem:[#allocation5 + $0x24] sm:$0xf]
    %v158 = vld [vmem:[#allocation5 + $0x28] sm:$0xf]
    %v159 = vld [vmem:[#allocation5 + $0x2c] sm:$0xf]
    %v160 = vld [vmem:[#allocation5 + $0x30] sm:$0xf]
    %v161 = vld [vmem:[#allocation5 + $0x34] sm:$0xf]
    %v162 = vld [vmem:[#allocation5 + $0x38] sm:$0xf]
    %v163 = vld [vmem:[#allocation5 + $0x3c] sm:$0xf]
    %v164 = vld [vmem:[%s2] sm:$0x1]
    %v166 = vperm.slane %v164, 0
    %v170 = vunpack.c.l.b16 %v146
    %v171 = vunpack.c.l.b16 %v147
    %v172 = vpack.c.b16 %v171, %v170
    %v190 = vunpack.c.l.b16 %v148
    %v191 = vunpack.c.l.b16 %v149
    %v192 = vunpack.c.l.b16 %v150
    %v193 = vunpack.c.l.b16 %v151
    %v194 = vunpack.c.l.b16 %v152
    %v195 = vunpack.c.l.b16 %v153
    %v196 = vunpack.c.l.b16 %v154
    %v197 = vunpack.c.l.b16 %v155
    %v198 = vunpack.c.l.b16 %v156
    %v199 = vunpack.c.l.b16 %v157
    %v200 = vunpack.c.l.b16 %v158
    %v201 = vunpack.c.l.b16 %v159
    %v202 = vunpack.c.l.b16 %v160
    %v203 = vunpack.c.l.b16 %v161
    %v204 = vunpack.c.l.b16 %v162
    %v205 = vunpack.c.l.b16 %v163
    %v206 = vpack.c.b16 %v191, %v190
    %v207 = vpack.c.b16 %v193, %v192
    %v208 = vpack.c.b16 %v195, %v194
    %v209 = vpack.c.b16 %v197, %v196
    %v210 = vpack.c.b16 %v199, %v198
    %v211 = vpack.c.b16 %v201, %v200
    %v212 = vpack.c.b16 %v203, %v202
    %v213 = vpack.c.b16 %v205, %v204
    %222 = vmatpush.bf16.msra.mxu0 %v213
    %223 = vmatpush.bf16.msra.mxu0 %v212
    %224 = vmatpush.bf16.msra.mxu0 %v211
    %225 = vmatpush.bf16.msra.mxu0 %v210
    %226 = vmatpush.bf16.msra.mxu0 %v209
    %227 = vmatpush.bf16.msra.mxu0 %v208
    %228 = vmatpush.bf16.msra.mxu0 %v207
    %229 = vmatpush.bf16.msra.mxu0 %v206
    %230 = vmatmul.bf16.gmra.mxu0 %v172
    %v231 = vpop.f32.mrf.mxu0
    %v232 = vadd.f32 %v166, %v231
    %v233 = vpop.f32.mrf.mxu0
    %v234 = vadd.f32 %v166, %v233
    %235 = vdwg.mxu0
    %v236 = vtanh.pop %v232
    %v237 = vtanh.pop %v234
    %v238 = vpack.c.bf16 %v237, %v236
    %v239 = vld [vmem:[#allocation7] sm:$0xf]
    %v240 = vld [vmem:[#allocation7 + $0x4] sm:$0xf]
    %v241 = vld [vmem:[#allocation7 + $0x8] sm:$0xf]
    %v242 = vld [vmem:[#allocation7 + $0xc] sm:$0xf]
    %v243 = vld [vmem:[#allocation7 + $0x10] sm:$0xf]
    %v244 = vld [vmem:[#allocation7 + $0x14] sm:$0xf]
    %v245 = vld [vmem:[#allocation7 + $0x18] sm:$0xf]
    %v246 = vld [vmem:[#allocation7 + $0x1c] sm:$0xf]
    %v247 = vld [vmem:[#allocation7 + $0x20] sm:$0xf]
    %v248 = vld [vmem:[#allocation7 + $0x24] sm:$0xf]
    %v249 = vld [vmem:[#allocation7 + $0x28] sm:$0xf]
    %v250 = vld [vmem:[#allocation7 + $0x2c] sm:$0xf]
    %v251 = vld [vmem:[#allocation7 + $0x30] sm:$0xf]
    %v252 = vld [vmem:[#allocation7 + $0x34] sm:$0xf]
    %v253 = vld [vmem:[#allocation7 + $0x38] sm:$0xf]
    %v254 = vld [vmem:[#allocation7 + $0x3c] sm:$0xf]
    %v255 = vld [vmem:[#allocation8] sm:$0x1]
    %v257 = vperm.slane %v255, 0
    %v275 = vunpack.c.l.b16 %v239
    %v276 = vunpack.c.l.b16 %v240
    %v277 = vunpack.c.l.b16 %v241
    %v278 = vunpack.c.l.b16 %v242
    %v279 = vunpack.c.l.b16 %v243
    %v280 = vunpack.c.l.b16 %v244
    %v281 = vunpack.c.l.b16 %v245
    %v282 = vunpack.c.l.b16 %v246
    %v283 = vunpack.c.l.b16 %v247
    %v284 = vunpack.c.l.b16 %v248
    %v285 = vunpack.c.l.b16 %v249
    %v286 = vunpack.c.l.b16 %v250
    %v287 = vunpack.c.l.b16 %v251
    %v288 = vunpack.c.l.b16 %v252
    %v289 = vunpack.c.l.b16 %v253
    %v290 = vunpack.c.l.b16 %v254
    %v291 = vpack.c.b16 %v276, %v275
    %v292 = vpack.c.b16 %v278, %v277
    %v293 = vpack.c.b16 %v280, %v279
    %v294 = vpack.c.b16 %v282, %v281
    %v295 = vpack.c.b16 %v284, %v283
    %v296 = vpack.c.b16 %v286, %v285
    %v297 = vpack.c.b16 %v288, %v287
    %v298 = vpack.c.b16 %v290, %v289
    %307 = vmatpush.bf16.msra.mxu0 %v298
    %308 = vmatpush.bf16.msra.mxu0 %v297
    %309 = vmatpush.bf16.msra.mxu0 %v296
    %310 = vmatpush.bf16.msra.mxu0 %v295
    %311 = vmatpush.bf16.msra.mxu0 %v294
    %312 = vmatpush.bf16.msra.mxu0 %v293
    %313 = vmatpush.bf16.msra.mxu0 %v292
    %314 = vmatpush.bf16.msra.mxu0 %v291
    %315 = vmatmul.bf16.gmra.mxu0 %v238
    %v316 = vpop.f32.mrf.mxu0
    %v317 = vadd.f32 %v257, %v316
    %v318 = vpop.f32.mrf.mxu0
    %v319 = vadd.f32 %v257, %v318
    %320 = vdwg.mxu0
    %v321 = vtanh.pop %v317
    %v322 = vtanh.pop %v319
    %v323 = vpack.c.bf16 %v322, %v321
    %v324 = vld [vmem:[#allocation10] sm:$0xff]
    %v325 = vld [vmem:[#allocation10 + $0x8] sm:$0xff]
    %v326 = vld [vmem:[#allocation10 + $0x10] sm:$0xff]
    %v327 = vld [vmem:[#allocation10 + $0x18] sm:$0xff]
    %v328 = vld [vmem:[#allocation10 + $0x20] sm:$0xff]
    %v329 = vld [vmem:[#allocation10 + $0x28] sm:$0xff]
    %v330 = vld [vmem:[#allocation10 + $0x30] sm:$0xff]
    %v331 = vld [vmem:[#allocation10 + $0x38] sm:$0xff]
    %v332 = vld [vmem:[#allocation10 + $0x40] sm:$0xff]
    %v333 = vld [vmem:[#allocation10 + $0x48] sm:$0xff]
    %v334 = vld [vmem:[#allocation10 + $0x50] sm:$0xff]
    %v335 = vld [vmem:[#allocation10 + $0x58] sm:$0xff]
    %v336 = vld [vmem:[#allocation10 + $0x60] sm:$0xff]
    %v337 = vld [vmem:[#allocation10 + $0x68] sm:$0xff]
    %v338 = vld [vmem:[#allocation10 + $0x70] sm:$0xff]
    %v339 = vld [vmem:[#allocation10 + $0x78] sm:$0xff]
    %v340 = vld [vmem:[%s6] sm:$0x3]
    %v342 = vperm.slane %v340, 0
    %v343 = vperm.slane %v340, 1
    %v362 = vunpack.c.l.b16 %v324
    %v363 = vunpack.c.h.b16 %v324
    %v364 = vunpack.c.l.b16 %v325
    %v365 = vunpack.c.h.b16 %v325
    %v366 = vunpack.c.l.b16 %v326
    %v367 = vunpack.c.h.b16 %v326
    %v368 = vunpack.c.l.b16 %v327
    %v369 = vunpack.c.h.b16 %v327
    %v370 = vunpack.c.l.b16 %v328
    %v371 = vunpack.c.h.b16 %v328
    %v372 = vunpack.c.l.b16 %v329
    %v373 = vunpack.c.h.b16 %v329
    %v374 = vunpack.c.l.b16 %v330
    %v375 = vunpack.c.h.b16 %v330
    %v376 = vunpack.c.l.b16 %v331
    %v377 = vunpack.c.h.b16 %v331
    %v378 = vunpack.c.l.b16 %v332
    %v379 = vunpack.c.h.b16 %v332
    %v380 = vunpack.c.l.b16 %v333
    %v381 = vunpack.c.h.b16 %v333
    %v382 = vunpack.c.l.b16 %v334
    %v383 = vunpack.c.h.b16 %v334
    %v384 = vunpack.c.l.b16 %v335
    %v385 = vunpack.c.h.b16 %v335
    %v386 = vunpack.c.l.b16 %v336
    %v387 = vunpack.c.h.b16 %v336
    %v388 = vunpack.c.l.b16 %v337
    %v389 = vunpack.c.h.b16 %v337
    %v390 = vunpack.c.l.b16 %v338
    %v391 = vunpack.c.h.b16 %v338
    %v392 = vunpack.c.l.b16 %v339
    %v393 = vunpack.c.h.b16 %v339
    %v394 = vpack.c.b16 %v364, %v362
    %v395 = vpack.c.b16 %v365, %v363
    %v396 = vpack.c.b16 %v368, %v366
    %v397 = vpack.c.b16 %v369, %v367
    %v398 = vpack.c.b16 %v372, %v370
    %v399 = vpack.c.b16 %v373, %v371
    %v400 = vpack.c.b16 %v376, %v374
    %v401 = vpack.c.b16 %v377, %v375
    %v402 = vpack.c.b16 %v380, %v378
    %v403 = vpack.c.b16 %v381, %v379
    %v404 = vpack.c.b16 %v384, %v382
    %v405 = vpack.c.b16 %v385, %v383
    %v406 = vpack.c.b16 %v388, %v386
    %v407 = vpack.c.b16 %v389, %v387
    %v408 = vpack.c.b16 %v392, %v390
    %v409 = vpack.c.b16 %v393, %v391
    %426 = vmatpush.bf16.msra.mxu0 %v408
    %427 = vmatpush.bf16.msra.mxu0 %v406
    %428 = vmatpush.bf16.msra.mxu0 %v404
    %429 = vmatpush.bf16.msra.mxu0 %v402
    %430 = vmatpush.bf16.msra.mxu0 %v400
    %431 = vmatpush.bf16.msra.mxu0 %v398
    %432 = vmatpush.bf16.msra.mxu0 %v396
    %433 = vmatpush.bf16.msra.mxu0 %v394
    %434 = vmatmul.bf16.gmra.mxu0 %v323
    %v435 = vpop.f32.mrf.mxu0
    %v436 = vadd.f32 %v342, %v435
    %v437 = vpop.f32.mrf.mxu0
    %v438 = vadd.f32 %v342, %v437
    %439 = vdwg.mxu0
    %440 = vmatpush.bf16.msra.mxu0 %v409
    %441 = vmatpush.bf16.msra.mxu0 %v407
    %442 = vmatpush.bf16.msra.mxu0 %v405
    %443 = vmatpush.bf16.msra.mxu0 %v403
    %444 = vmatpush.bf16.msra.mxu0 %v401
    %445 = vmatpush.bf16.msra.mxu0 %v399
    %446 = vmatpush.bf16.msra.mxu0 %v397
    %447 = vmatpush.bf16.msra.mxu0 %v395
    %448 = vmatmul.bf16.gmra.mxu0 %v323
    %v449 = vpop.f32.mrf.mxu0
    %v450 = vadd.f32 %v343, %v449
    %v451 = vpop.f32.mrf.mxu0
    %v452 = vadd.f32 %v343, %v451
    %453 = vdwg.mxu0
    %v454 = vtanh.pop %v436
    %v455 = vtanh.pop %v450
    %v456 = vtanh.pop %v438
    %v457 = vtanh.pop %v452
    %v458 = vpack.c.bf16 %v456, %v454
    %v459 = vpack.c.bf16 %v457, %v455
    %v460 = vld [vmem:[#allocation11] sm:$0xff]
    %v461 = vld [vmem:[#allocation11 + $0x8] sm:$0xff]
    %v462 = vld [vmem:[#allocation11 + $0x10] sm:$0xff]
    %v463 = vld [vmem:[#allocation11 + $0x18] sm:$0xff]
    %v464 = vld [vmem:[#allocation11 + $0x20] sm:$0xff]
    %v465 = vld [vmem:[#allocation11 + $0x28] sm:$0xff]
    %v466 = vld [vmem:[#allocation11 + $0x30] sm:$0xff]
    %v467 = vld [vmem:[#allocation11 + $0x38] sm:$0xff]
    %v468 = vld [vmem:[#allocation11 + $0x40] sm:$0xff]
    %v469 = vld [vmem:[#allocation11 + $0x48] sm:$0xff]
    %v470 = vld [vmem:[#allocation11 + $0x50] sm:$0xff]
    %v471 = vld [vmem:[#allocation11 + $0x58] sm:$0xff]
    %v472 = vld [vmem:[#allocation11 + $0x60] sm:$0xff]
    %v473 = vld [vmem:[#allocation11 + $0x68] sm:$0xff]
    %v474 = vld [vmem:[#allocation11 + $0x70] sm:$0xff]
    %v475 = vld [vmem:[#allocation11 + $0x78] sm:$0xff]
    %v476 = vld [vmem:[#allocation11 + $0x80] sm:$0xff]
    %v477 = vld [vmem:[#allocation11 + $0x88] sm:$0xff]
    %v478 = vld [vmem:[#allocation11 + $0x90] sm:$0xff]
    %v479 = vld [vmem:[#allocation11 + $0x98] sm:$0xff]
    %v480 = vld [vmem:[#allocation11 + $0xa0] sm:$0xff]
    %v481 = vld [vmem:[#allocation11 + $0xa8] sm:$0xff]
    %v482 = vld [vmem:[#allocation11 + $0xb0] sm:$0xff]
    %v483 = vld [vmem:[#allocation11 + $0xb8] sm:$0xff]
    %v484 = vld [vmem:[#allocation11 + $0xc0] sm:$0xff]
    %v485 = vld [vmem:[#allocation11 + $0xc8] sm:$0xff]
    %v486 = vld [vmem:[#allocation11 + $0xd0] sm:$0xff]
    %v487 = vld [vmem:[#allocation11 + $0xd8] sm:$0xff]
    %v488 = vld [vmem:[#allocation11 + $0xe0] sm:$0xff]
    %v489 = vld [vmem:[#allocation11 + $0xe8] sm:$0xff]
    %v490 = vld [vmem:[#allocation11 + $0xf0] sm:$0xff]
    %v491 = vld [vmem:[#allocation11 + $0xf8] sm:$0xff]
    %v492 = vld [vmem:[#allocation11 + $0x100] sm:$0xff]
    %v493 = vld [vmem:[#allocation11 + $0x108] sm:$0xff]
    %v494 = vld [vmem:[#allocation11 + $0x110] sm:$0xff]
    %v495 = vld [vmem:[#allocation11 + $0x118] sm:$0xff]
    %v496 = vld [vmem:[#allocation11 + $0x120] sm:$0xff]
    %v497 = vld [vmem:[#allocation11 + $0x128] sm:$0xff]
    %v498 = vld [vmem:[#allocation11 + $0x130] sm:$0xff]
    %v499 = vld [vmem:[#allocation11 + $0x138] sm:$0xff]
    %v500 = vld [vmem:[#allocation11 + $0x140] sm:$0xff]
    %v501 = vld [vmem:[#allocation11 + $0x148] sm:$0xff]
    %v502 = vld [vmem:[#allocation11 + $0x150] sm:$0xff]
    %v503 = vld [vmem:[#allocation11 + $0x158] sm:$0xff]
    %v504 = vld [vmem:[#allocation11 + $0x160] sm:$0xff]
    %v505 = vld [vmem:[#allocation11 + $0x168] sm:$0xff]
    %v506 = vld [vmem:[#allocation11 + $0x170] sm:$0xff]
    %v507 = vld [vmem:[#allocation11 + $0x178] sm:$0xff]
    %v508 = vld [vmem:[#allocation11 + $0x180] sm:$0xff]
    %v509 = vld [vmem:[#allocation11 + $0x188] sm:$0xff]
    %v510 = vld [vmem:[#allocation11 + $0x190] sm:$0xff]
    %v511 = vld [vmem:[#allocation11 + $0x198] sm:$0xff]
    %v512 = vld [vmem:[#allocation11 + $0x1a0] sm:$0xff]
    %v513 = vld [vmem:[#allocation11 + $0x1a8] sm:$0xff]
    %v514 = vld [vmem:[#allocation11 + $0x1b0] sm:$0xff]
    %v515 = vld [vmem:[#allocation11 + $0x1b8] sm:$0xff]
    %v516 = vld [vmem:[#allocation11 + $0x1c0] sm:$0xff]
    %v517 = vld [vmem:[#allocation11 + $0x1c8] sm:$0xff]
    %v518 = vld [vmem:[#allocation11 + $0x1d0] sm:$0xff]
    %v519 = vld [vmem:[#allocation11 + $0x1d8] sm:$0xff]
    %v520 = vld [vmem:[#allocation11 + $0x1e0] sm:$0xff]
    %v521 = vld [vmem:[#allocation11 + $0x1e8] sm:$0xff]
    %v522 = vld [vmem:[#allocation11 + $0x1f0] sm:$0xff]
    %v523 = vld [vmem:[#allocation11 + $0x1f8] sm:$0xff]
    %v524 = vld [vmem:[%s8] sm:$0xf]
    %v526 = vperm.slane %v524, 0
    %v527 = vperm.slane %v524, 1
    %v528 = vperm.slane %v524, 2
    %v529 = vperm.slane %v524, 3
    %v598 = vunpack.c.l.b16 %v460
    %v599 = vunpack.c.h.b16 %v460
    %v600 = vunpack.c.l.b16 %v461
    %v601 = vunpack.c.h.b16 %v461
    %v602 = vunpack.c.l.b16 %v462
    %v603 = vunpack.c.h.b16 %v462
    %v604 = vunpack.c.l.b16 %v463
    %v605 = vunpack.c.h.b16 %v463
    %v606 = vunpack.c.l.b16 %v464
    %v607 = vunpack.c.h.b16 %v464
    %v608 = vunpack.c.l.b16 %v465
    %v609 = vunpack.c.h.b16 %v465
    %v610 = vunpack.c.l.b16 %v466
    %v611 = vunpack.c.h.b16 %v466
    %v612 = vunpack.c.l.b16 %v467
    %v613 = vunpack.c.h.b16 %v467
    %v614 = vunpack.c.l.b16 %v468
    %v615 = vunpack.c.h.b16 %v468
    %v616 = vunpack.c.l.b16 %v469
    %v617 = vunpack.c.h.b16 %v469
    %v618 = vunpack.c.l.b16 %v470
    %v619 = vunpack.c.h.b16 %v470
    %v620 = vunpack.c.l.b16 %v471
    %v621 = vunpack.c.h.b16 %v471
    %v622 = vunpack.c.l.b16 %v472
    %v623 = vunpack.c.h.b16 %v472
    %v624 = vunpack.c.l.b16 %v473
    %v625 = vunpack.c.h.b16 %v473
    %v626 = vunpack.c.l.b16 %v474
    %v627 = vunpack.c.h.b16 %v474
    %v628 = vunpack.c.l.b16 %v475
    %v629 = vunpack.c.h.b16 %v475
    %v630 = vunpack.c.l.b16 %v476
    %v631 = vunpack.c.h.b16 %v476
    %v632 = vunpack.c.l.b16 %v477
    %v633 = vunpack.c.h.b16 %v477
    %v634 = vunpack.c.l.b16 %v478
    %v635 = vunpack.c.h.b16 %v478
    %v636 = vunpack.c.l.b16 %v479
    %v637 = vunpack.c.h.b16 %v479
    %v638 = vunpack.c.l.b16 %v480
    %v639 = vunpack.c.h.b16 %v480
    %v640 = vunpack.c.l.b16 %v481
    %v641 = vunpack.c.h.b16 %v481
    %v642 = vunpack.c.l.b16 %v482
    %v643 = vunpack.c.h.b16 %v482
    %v644 = vunpack.c.l.b16 %v483
    %v645 = vunpack.c.h.b16 %v483
    %v646 = vunpack.c.l.b16 %v484
    %v647 = vunpack.c.h.b16 %v484
    %v648 = vunpack.c.l.b16 %v485
    %v649 = vunpack.c.h.b16 %v485
    %v650 = vunpack.c.l.b16 %v486
    %v651 = vunpack.c.h.b16 %v486
    %v652 = vunpack.c.l.b16 %v487
    %v653 = vunpack.c.h.b16 %v487
    %v654 = vunpack.c.l.b16 %v488
    %v655 = vunpack.c.h.b16 %v488
    %v656 = vunpack.c.l.b16 %v489
    %v657 = vunpack.c.h.b16 %v489
    %v658 = vunpack.c.l.b16 %v490
    %v659 = vunpack.c.h.b16 %v490
    %v660 = vunpack.c.l.b16 %v491
    %v661 = vunpack.c.h.b16 %v491
    %v662 = vunpack.c.l.b16 %v492
    %v663 = vunpack.c.h.b16 %v492
    %v664 = vunpack.c.l.b16 %v493
    %v665 = vunpack.c.h.b16 %v493
    %v666 = vunpack.c.l.b16 %v494
    %v667 = vunpack.c.h.b16 %v494
    %v668 = vunpack.c.l.b16 %v495
    %v669 = vunpack.c.h.b16 %v495
    %v670 = vunpack.c.l.b16 %v496
    %v671 = vunpack.c.h.b16 %v496
    %v672 = vunpack.c.l.b16 %v497
    %v673 = vunpack.c.h.b16 %v497
    %v674 = vunpack.c.l.b16 %v498
    %v675 = vunpack.c.h.b16 %v498
    %v676 = vunpack.c.l.b16 %v499
    %v677 = vunpack.c.h.b16 %v499
    %v678 = vunpack.c.l.b16 %v500
    %v679 = vunpack.c.h.b16 %v500
    %v680 = vunpack.c.l.b16 %v501
    %v681 = vunpack.c.h.b16 %v501
    %v682 = vunpack.c.l.b16 %v502
    %v683 = vunpack.c.h.b16 %v502
    %v684 = vunpack.c.l.b16 %v503
    %v685 = vunpack.c.h.b16 %v503
    %v686 = vunpack.c.l.b16 %v504
    %v687 = vunpack.c.h.b16 %v504
    %v688 = vunpack.c.l.b16 %v505
    %v689 = vunpack.c.h.b16 %v505
    %v690 = vunpack.c.l.b16 %v506
    %v691 = vunpack.c.h.b16 %v506
    %v692 = vunpack.c.l.b16 %v507
    %v693 = vunpack.c.h.b16 %v507
    %v694 = vunpack.c.l.b16 %v508
    %v695 = vunpack.c.h.b16 %v508
    %v696 = vunpack.c.l.b16 %v509
    %v697 = vunpack.c.h.b16 %v509
    %v698 = vunpack.c.l.b16 %v510
    %v699 = vunpack.c.h.b16 %v510
    %v700 = vunpack.c.l.b16 %v511
    %v701 = vunpack.c.h.b16 %v511
    %v702 = vunpack.c.l.b16 %v512
    %v703 = vunpack.c.h.b16 %v512
    %v704 = vunpack.c.l.b16 %v513
    %v705 = vunpack.c.h.b16 %v513
    %v706 = vunpack.c.l.b16 %v514
    %v707 = vunpack.c.h.b16 %v514
    %v708 = vunpack.c.l.b16 %v515
    %v709 = vunpack.c.h.b16 %v515
    %v710 = vunpack.c.l.b16 %v516
    %v711 = vunpack.c.h.b16 %v516
    %v712 = vunpack.c.l.b16 %v517
    %v713 = vunpack.c.h.b16 %v517
    %v714 = vunpack.c.l.b16 %v518
    %v715 = vunpack.c.h.b16 %v518
    %v716 = vunpack.c.l.b16 %v519
    %v717 = vunpack.c.h.b16 %v519
    %v718 = vunpack.c.l.b16 %v520
    %v719 = vunpack.c.h.b16 %v520
    %v720 = vunpack.c.l.b16 %v521
    %v721 = vunpack.c.h.b16 %v521
    %v722 = vunpack.c.l.b16 %v522
    %v723 = vunpack.c.h.b16 %v522
    %v724 = vunpack.c.l.b16 %v523
    %v725 = vunpack.c.h.b16 %v523
    %v726 = vpack.c.b16 %v602, %v598
    %v727 = vpack.c.b16 %v603, %v599
    %v728 = vpack.c.b16 %v604, %v600
    %v729 = vpack.c.b16 %v605, %v601
    %v730 = vpack.c.b16 %v610, %v606
    %v731 = vpack.c.b16 %v611, %v607
    %v732 = vpack.c.b16 %v612, %v608
    %v733 = vpack.c.b16 %v613, %v609
    %v734 = vpack.c.b16 %v618, %v614
    %v735 = vpack.c.b16 %v619, %v615
    %v736 = vpack.c.b16 %v620, %v616
    %v737 = vpack.c.b16 %v621, %v617
    %v738 = vpack.c.b16 %v626, %v622
    %v739 = vpack.c.b16 %v627, %v623
    %v740 = vpack.c.b16 %v628, %v624
    %v741 = vpack.c.b16 %v629, %v625
    %v742 = vpack.c.b16 %v634, %v630
    %v743 = vpack.c.b16 %v635, %v631
    %v744 = vpack.c.b16 %v636, %v632
    %v745 = vpack.c.b16 %v637, %v633
    %v746 = vpack.c.b16 %v642, %v638
    %v747 = vpack.c.b16 %v643, %v639
    %v748 = vpack.c.b16 %v644, %v640
    %v749 = vpack.c.b16 %v645, %v641
    %v750 = vpack.c.b16 %v650, %v646
    %v751 = vpack.c.b16 %v651, %v647
    %v752 = vpack.c.b16 %v652, %v648
    %v753 = vpack.c.b16 %v653, %v649
    %v754 = vpack.c.b16 %v658, %v654
    %v755 = vpack.c.b16 %v659, %v655
    %v756 = vpack.c.b16 %v660, %v656
    %v757 = vpack.c.b16 %v661, %v657
    %v758 = vpack.c.b16 %v666, %v662
    %v759 = vpack.c.b16 %v667, %v663
    %v760 = vpack.c.b16 %v668, %v664
    %v761 = vpack.c.b16 %v669, %v665
    %v762 = vpack.c.b16 %v674, %v670
    %v763 = vpack.c.b16 %v675, %v671
    %v764 = vpack.c.b16 %v676, %v672
    %v765 = vpack.c.b16 %v677, %v673
    %v766 = vpack.c.b16 %v682, %v678
    %v767 = vpack.c.b16 %v683, %v679
    %v768 = vpack.c.b16 %v684, %v680
    %v769 = vpack.c.b16 %v685, %v681
    %v770 = vpack.c.b16 %v690, %v686
    %v771 = vpack.c.b16 %v691, %v687
    %v772 = vpack.c.b16 %v692, %v688
    %v773 = vpack.c.b16 %v693, %v689
    %v774 = vpack.c.b16 %v698, %v694
    %v775 = vpack.c.b16 %v699, %v695
    %v776 = vpack.c.b16 %v700, %v696
    %v777 = vpack.c.b16 %v701, %v697
    %v778 = vpack.c.b16 %v706, %v702
    %v779 = vpack.c.b16 %v707, %v703
    %v780 = vpack.c.b16 %v708, %v704
    %v781 = vpack.c.b16 %v709, %v705
    %v782 = vpack.c.b16 %v714, %v710
    %v783 = vpack.c.b16 %v715, %v711
    %v784 = vpack.c.b16 %v716, %v712
    %v785 = vpack.c.b16 %v717, %v713
    %v786 = vpack.c.b16 %v722, %v718
    %v787 = vpack.c.b16 %v723, %v719
    %v788 = vpack.c.b16 %v724, %v720
    %v789 = vpack.c.b16 %v725, %v721
    %854 = vmatpush.bf16.msra.mxu0 %v754
    %855 = vmatpush.bf16.msra.mxu0 %v750
    %856 = vmatpush.bf16.msra.mxu0 %v746
    %857 = vmatpush.bf16.msra.mxu0 %v742
    %858 = vmatpush.bf16.msra.mxu0 %v738
    %859 = vmatpush.bf16.msra.mxu0 %v734
    %860 = vmatpush.bf16.msra.mxu0 %v730
    %861 = vmatpush.bf16.msra.mxu0 %v726
    %862 = vmatmul.bf16.gmra.mxu0 %v458
    %v863 = vpop.f32.mrf.mxu0
    %v864 = vadd.f32 %v526, %v863
    %v865 = vpop.f32.mrf.mxu0
    %v866 = vadd.f32 %v526, %v865
    %867 = vdwg.mxu0
    %868 = vmatpush.bf16.msra.mxu0 %v786
    %869 = vmatpush.bf16.msra.mxu0 %v782
    %870 = vmatpush.bf16.msra.mxu0 %v778
    %871 = vmatpush.bf16.msra.mxu0 %v774
    %872 = vmatpush.bf16.msra.mxu0 %v770
    %873 = vmatpush.bf16.msra.mxu0 %v766
    %874 = vmatpush.bf16.msra.mxu0 %v762
    %875 = vmatpush.bf16.msra.mxu0 %v758
    %876 = vmatmul.bf16.gmra.mxu0 %v459
    %v877 = vpop.f32.mrf.mxu0
    %v878 = vadd.f32 %v864, %v877
    %v879 = vpop.f32.mrf.mxu0
    %v880 = vadd.f32 %v866, %v879
    %881 = vdwg.mxu0
    %882 = vmatpush.bf16.msra.mxu0 %v755
    %883 = vmatpush.bf16.msra.mxu0 %v751
    %884 = vmatpush.bf16.msra.mxu0 %v747
    %885 = vmatpush.bf16.msra.mxu0 %v743
    %886 = vmatpush.bf16.msra.mxu0 %v739
    %887 = vmatpush.bf16.msra.mxu0 %v735
    %888 = vmatpush.bf16.msra.mxu0 %v731
    %889 = vmatpush.bf16.msra.mxu0 %v727
    %890 = vmatmul.bf16.gmra.mxu0 %v458
    %v891 = vpop.f32.mrf.mxu0
    %v892 = vadd.f32 %v527, %v891
    %v893 = vpop.f32.mrf.mxu0
    %v894 = vadd.f32 %v527, %v893
    %895 = vdwg.mxu0
    %896 = vmatpush.bf16.msra.mxu0 %v787
    %897 = vmatpush.bf16.msra.mxu0 %v783
    %898 = vmatpush.bf16.msra.mxu0 %v779
    %899 = vmatpush.bf16.msra.mxu0 %v775
    %900 = vmatpush.bf16.msra.mxu0 %v771
    %901 = vmatpush.bf16.msra.mxu0 %v767
    %902 = vmatpush.bf16.msra.mxu0 %v763
    %903 = vmatpush.bf16.msra.mxu0 %v759
    %904 = vmatmul.bf16.gmra.mxu0 %v459
    %v905 = vpop.f32.mrf.mxu0
    %v906 = vadd.f32 %v892, %v905
    %v907 = vpop.f32.mrf.mxu0
    %v908 = vadd.f32 %v894, %v907
    %909 = vdwg.mxu0
    %910 = vmatpush.bf16.msra.mxu0 %v756
    %911 = vmatpush.bf16.msra.mxu0 %v752
    %912 = vmatpush.bf16.msra.mxu0 %v748
    %913 = vmatpush.bf16.msra.mxu0 %v744
    %914 = vmatpush.bf16.msra.mxu0 %v740
    %915 = vmatpush.bf16.msra.mxu0 %v736
    %916 = vmatpush.bf16.msra.mxu0 %v732
    %917 = vmatpush.bf16.msra.mxu0 %v728
    %918 = vmatmul.bf16.gmra.mxu0 %v458
    %v919 = vpop.f32.mrf.mxu0
    %v920 = vadd.f32 %v528, %v919
    %v921 = vpop.f32.mrf.mxu0
    %v922 = vadd.f32 %v528, %v921
    %923 = vdwg.mxu0
    %924 = vmatpush.bf16.msra.mxu0 %v788
    %925 = vmatpush.bf16.msra.mxu0 %v784
    %926 = vmatpush.bf16.msra.mxu0 %v780
    %927 = vmatpush.bf16.msra.mxu0 %v776
    %928 = vmatpush.bf16.msra.mxu0 %v772
    %929 = vmatpush.bf16.msra.mxu0 %v768
    %930 = vmatpush.bf16.msra.mxu0 %v764
    %931 = vmatpush.bf16.msra.mxu0 %v760
    %932 = vmatmul.bf16.gmra.mxu0 %v459
    %v933 = vpop.f32.mrf.mxu0
    %v934 = vadd.f32 %v920, %v933
    %v935 = vpop.f32.mrf.mxu0
    %v936 = vadd.f32 %v922, %v935
    %937 = vdwg.mxu0
    %938 = vmatpush.bf16.msra.mxu0 %v757
    %939 = vmatpush.bf16.msra.mxu0 %v753
    %940 = vmatpush.bf16.msra.mxu0 %v749
    %941 = vmatpush.bf16.msra.mxu0 %v745
    %942 = vmatpush.bf16.msra.mxu0 %v741
    %943 = vmatpush.bf16.msra.mxu0 %v737
    %944 = vmatpush.bf16.msra.mxu0 %v733
    %945 = vmatpush.bf16.msra.mxu0 %v729
    %946 = vmatmul.bf16.gmra.mxu0 %v458
    %v947 = vpop.f32.mrf.mxu0
    %v948 = vadd.f32 %v529, %v947
    %v949 = vpop.f32.mrf.mxu0
    %v950 = vadd.f32 %v529, %v949
    %951 = vdwg.mxu0
    %952 = vmatpush.bf16.msra.mxu0 %v789
    %953 = vmatpush.bf16.msra.mxu0 %v785
    %954 = vmatpush.bf16.msra.mxu0 %v781
    %955 = vmatpush.bf16.msra.mxu0 %v777
    %956 = vmatpush.bf16.msra.mxu0 %v773
    %957 = vmatpush.bf16.msra.mxu0 %v769
    %958 = vmatpush.bf16.msra.mxu0 %v765
    %959 = vmatpush.bf16.msra.mxu0 %v761
    %960 = vmatmul.bf16.gmra.mxu0 %v459
    %v961 = vpop.f32.mrf.mxu0
    %v962 = vadd.f32 %v948, %v961
    %v963 = vpop.f32.mrf.mxu0
    %v964 = vadd.f32 %v950, %v963
    %965 = vdwg.mxu0
    %v966 = vtanh.pop %v878
    %v967 = vtanh.pop %v906
    %v968 = vtanh.pop %v934
    %v969 = vtanh.pop %v962
    %v970 = vtanh.pop %v880
    %v971 = vtanh.pop %v908
    %v972 = vtanh.pop %v936
    %v973 = vtanh.pop %v964
    %v974 = vpack.c.bf16 %v970, %v966
    %v975 = vpack.c.bf16 %v971, %v967
    %v976 = vpack.c.bf16 %v972, %v968
    %v977 = vpack.c.bf16 %v973, %v969
    %v978 = vld [vmem:[#allocation13] sm:$0xf]
    %v979 = vld [vmem:[#allocation13 + $0x4] sm:$0xf]
    %v980 = vld [vmem:[#allocation13 + $0x8] sm:$0xf]
    %v981 = vld [vmem:[#allocation13 + $0xc] sm:$0xf]
    %v982 = vld [vmem:[#allocation13 + $0x10] sm:$0xf]
    %v983 = vld [vmem:[#allocation13 + $0x14] sm:$0xf]
    %v984 = vld [vmem:[#allocation13 + $0x18] sm:$0xf]
    %v985 = vld [vmem:[#allocation13 + $0x1c] sm:$0xf]
    %v986 = vld [vmem:[#allocation13 + $0x20] sm:$0xf]
    %v987 = vld [vmem:[#allocation13 + $0x24] sm:$0xf]
    %v988 = vld [vmem:[#allocation13 + $0x28] sm:$0xf]
    %v989 = vld [vmem:[#allocation13 + $0x2c] sm:$0xf]
    %v990 = vld [vmem:[#allocation13 + $0x30] sm:$0xf]
    %v991 = vld [vmem:[#allocation13 + $0x34] sm:$0xf]
    %v992 = vld [vmem:[#allocation13 + $0x38] sm:$0xf]
    %v993 = vld [vmem:[#allocation13 + $0x3c] sm:$0xf]
    %v994 = vld [vmem:[#allocation13 + $0x40] sm:$0xf]
    %v995 = vld [vmem:[#allocation13 + $0x44] sm:$0xf]
    %v996 = vld [vmem:[#allocation13 + $0x48] sm:$0xf]
    %v997 = vld [vmem:[#allocation13 + $0x4c] sm:$0xf]
    %v998 = vld [vmem:[#allocation13 + $0x50] sm:$0xf]
    %v999 = vld [vmem:[#allocation13 + $0x54] sm:$0xf]
    %v1000 = vld [vmem:[#allocation13 + $0x58] sm:$0xf]
    %v1001 = vld [vmem:[#allocation13 + $0x5c] sm:$0xf]
    %v1002 = vld [vmem:[#allocation13 + $0x60] sm:$0xf]
    %v1003 = vld [vmem:[#allocation13 + $0x64] sm:$0xf]
    %v1004 = vld [vmem:[#allocation13 + $0x68] sm:$0xf]
    %v1005 = vld [vmem:[#allocation13 + $0x6c] sm:$0xf]
    %v1006 = vld [vmem:[#allocation13 + $0x70] sm:$0xf]
    %v1007 = vld [vmem:[#allocation13 + $0x74] sm:$0xf]
    %v1008 = vld [vmem:[#allocation13 + $0x78] sm:$0xf]
    %v1009 = vld [vmem:[#allocation13 + $0x7c] sm:$0xf]
    %v1010 = vld [vmem:[#allocation13 + $0x80] sm:$0xf]
    %v1011 = vld [vmem:[#allocation13 + $0x84] sm:$0xf]
    %v1012 = vld [vmem:[#allocation13 + $0x88] sm:$0xf]
    %v1013 = vld [vmem:[#allocation13 + $0x8c] sm:$0xf]
    %v1014 = vld [vmem:[#allocation13 + $0x90] sm:$0xf]
    %v1015 = vld [vmem:[#allocation13 + $0x94] sm:$0xf]
    %v1016 = vld [vmem:[#allocation13 + $0x98] sm:$0xf]
    %v1017 = vld [vmem:[#allocation13 + $0x9c] sm:$0xf]
    %v1018 = vld [vmem:[#allocation13 + $0xa0] sm:$0xf]
    %v1019 = vld [vmem:[#allocation13 + $0xa4] sm:$0xf]
    %v1020 = vld [vmem:[#allocation13 + $0xa8] sm:$0xf]
    %v1021 = vld [vmem:[#allocation13 + $0xac] sm:$0xf]
    %v1022 = vld [vmem:[#allocation13 + $0xb0] sm:$0xf]
    %v1023 = vld [vmem:[#allocation13 + $0xb4] sm:$0xf]
    %v1024 = vld [vmem:[#allocation13 + $0xb8] sm:$0xf]
    %v1025 = vld [vmem:[#allocation13 + $0xbc] sm:$0xf]
    %v1026 = vld [vmem:[#allocation13 + $0xc0] sm:$0xf]
    %v1027 = vld [vmem:[#allocation13 + $0xc4] sm:$0xf]
    %v1028 = vld [vmem:[#allocation13 + $0xc8] sm:$0xf]
    %v1029 = vld [vmem:[#allocation13 + $0xcc] sm:$0xf]
    %v1030 = vld [vmem:[#allocation13 + $0xd0] sm:$0xf]
    %v1031 = vld [vmem:[#allocation13 + $0xd4] sm:$0xf]
    %v1032 = vld [vmem:[#allocation13 + $0xd8] sm:$0xf]
    %v1033 = vld [vmem:[#allocation13 + $0xdc] sm:$0xf]
    %v1034 = vld [vmem:[#allocation13 + $0xe0] sm:$0xf]
    %v1035 = vld [vmem:[#allocation13 + $0xe4] sm:$0xf]
    %v1036 = vld [vmem:[#allocation13 + $0xe8] sm:$0xf]
    %v1037 = vld [vmem:[#allocation13 + $0xec] sm:$0xf]
    %v1038 = vld [vmem:[#allocation13 + $0xf0] sm:$0xf]
    %v1039 = vld [vmem:[#allocation13 + $0xf4] sm:$0xf]
    %v1040 = vld [vmem:[#allocation13 + $0xf8] sm:$0xf]
    %v1041 = vld [vmem:[#allocation13 + $0xfc] sm:$0xf]
    %v1042 = vld [vmem:[%s10] sm:$0x1]
    %v1044 = vperm.slane %v1042, 0
    %v1110 = vunpack.c.l.b16 %v978
    %v1111 = vunpack.c.l.b16 %v979
    %v1112 = vunpack.c.l.b16 %v980
    %v1113 = vunpack.c.l.b16 %v981
    %v1114 = vunpack.c.l.b16 %v982
    %v1115 = vunpack.c.l.b16 %v983
    %v1116 = vunpack.c.l.b16 %v984
    %v1117 = vunpack.c.l.b16 %v985
    %v1118 = vunpack.c.l.b16 %v986
    %v1119 = vunpack.c.l.b16 %v987
    %v1120 = vunpack.c.l.b16 %v988
    %v1121 = vunpack.c.l.b16 %v989
    %v1122 = vunpack.c.l.b16 %v990
    %v1123 = vunpack.c.l.b16 %v991
    %v1124 = vunpack.c.l.b16 %v992
    %v1125 = vunpack.c.l.b16 %v993
    %v1126 = vunpack.c.l.b16 %v994
    %v1127 = vunpack.c.l.b16 %v995
    %v1128 = vunpack.c.l.b16 %v996
    %v1129 = vunpack.c.l.b16 %v997
    %v1130 = vunpack.c.l.b16 %v998
    %v1131 = vunpack.c.l.b16 %v999
    %v1132 = vunpack.c.l.b16 %v1000
    %v1133 = vunpack.c.l.b16 %v1001
    %v1134 = vunpack.c.l.b16 %v1002
    %v1135 = vunpack.c.l.b16 %v1003
    %v1136 = vunpack.c.l.b16 %v1004
    %v1137 = vunpack.c.l.b16 %v1005
    %v1138 = vunpack.c.l.b16 %v1006
    %v1139 = vunpack.c.l.b16 %v1007
    %v1140 = vunpack.c.l.b16 %v1008
    %v1141 = vunpack.c.l.b16 %v1009
    %v1142 = vunpack.c.l.b16 %v1010
    %v1143 = vunpack.c.l.b16 %v1011
    %v1144 = vunpack.c.l.b16 %v1012
    %v1145 = vunpack.c.l.b16 %v1013
    %v1146 = vunpack.c.l.b16 %v1014
    %v1147 = vunpack.c.l.b16 %v1015
    %v1148 = vunpack.c.l.b16 %v1016
    %v1149 = vunpack.c.l.b16 %v1017
    %v1150 = vunpack.c.l.b16 %v1018
    %v1151 = vunpack.c.l.b16 %v1019
    %v1152 = vunpack.c.l.b16 %v1020
    %v1153 = vunpack.c.l.b16 %v1021
    %v1154 = vunpack.c.l.b16 %v1022
    %v1155 = vunpack.c.l.b16 %v1023
    %v1156 = vunpack.c.l.b16 %v1024
    %v1157 = vunpack.c.l.b16 %v1025
    %v1158 = vunpack.c.l.b16 %v1026
    %v1159 = vunpack.c.l.b16 %v1027
    %v1160 = vunpack.c.l.b16 %v1028
    %v1161 = vunpack.c.l.b16 %v1029
    %v1162 = vunpack.c.l.b16 %v1030
    %v1163 = vunpack.c.l.b16 %v1031
    %v1164 = vunpack.c.l.b16 %v1032
    %v1165 = vunpack.c.l.b16 %v1033
    %v1166 = vunpack.c.l.b16 %v1034
    %v1167 = vunpack.c.l.b16 %v1035
    %v1168 = vunpack.c.l.b16 %v1036
    %v1169 = vunpack.c.l.b16 %v1037
    %v1170 = vunpack.c.l.b16 %v1038
    %v1171 = vunpack.c.l.b16 %v1039
    %v1172 = vunpack.c.l.b16 %v1040
    %v1173 = vunpack.c.l.b16 %v1041
    %v1174 = vpack.c.b16 %v1111, %v1110
    %v1175 = vpack.c.b16 %v1113, %v1112
    %v1176 = vpack.c.b16 %v1115, %v1114
    %v1177 = vpack.c.b16 %v1117, %v1116
    %v1178 = vpack.c.b16 %v1119, %v1118
    %v1179 = vpack.c.b16 %v1121, %v1120
    %v1180 = vpack.c.b16 %v1123, %v1122
    %v1181 = vpack.c.b16 %v1125, %v1124
    %v1182 = vpack.c.b16 %v1127, %v1126
    %v1183 = vpack.c.b16 %v1129, %v1128
    %v1184 = vpack.c.b16 %v1131, %v1130
    %v1185 = vpack.c.b16 %v1133, %v1132
    %v1186 = vpack.c.b16 %v1135, %v1134
    %v1187 = vpack.c.b16 %v1137, %v1136
    %v1188 = vpack.c.b16 %v1139, %v1138
    %v1189 = vpack.c.b16 %v1141, %v1140
    %v1190 = vpack.c.b16 %v1143, %v1142
    %v1191 = vpack.c.b16 %v1145, %v1144
    %v1192 = vpack.c.b16 %v1147, %v1146
    %v1193 = vpack.c.b16 %v1149, %v1148
    %v1194 = vpack.c.b16 %v1151, %v1150
    %v1195 = vpack.c.b16 %v1153, %v1152
    %v1196 = vpack.c.b16 %v1155, %v1154
    %v1197 = vpack.c.b16 %v1157, %v1156
    %v1198 = vpack.c.b16 %v1159, %v1158
    %v1199 = vpack.c.b16 %v1161, %v1160
    %v1200 = vpack.c.b16 %v1163, %v1162
    %v1201 = vpack.c.b16 %v1165, %v1164
    %v1202 = vpack.c.b16 %v1167, %v1166
    %v1203 = vpack.c.b16 %v1169, %v1168
    %v1204 = vpack.c.b16 %v1171, %v1170
    %v1205 = vpack.c.b16 %v1173, %v1172
    %1238 = vmatpush.bf16.msra.mxu0 %v1181
    %1239 = vmatpush.bf16.msra.mxu0 %v1180
    %1240 = vmatpush.bf16.msra.mxu0 %v1179
    %1241 = vmatpush.bf16.msra.mxu0 %v1178
    %1242 = vmatpush.bf16.msra.mxu0 %v1177
    %1243 = vmatpush.bf16.msra.mxu0 %v1176
    %1244 = vmatpush.bf16.msra.mxu0 %v1175
    %1245 = vmatpush.bf16.msra.mxu0 %v1174
    %1246 = vmatmul.bf16.gmra.mxu0 %v974
    %v1247 = vpop.f32.mrf.mxu0
    %v1248 = vadd.f32 %v1044, %v1247
    %v1249 = vpop.f32.mrf.mxu0
    %v1250 = vadd.f32 %v1044, %v1249
    %1251 = vdwg.mxu0
    %1252 = vmatpush.bf16.msra.mxu0 %v1189
    %1253 = vmatpush.bf16.msra.mxu0 %v1188
    %1254 = vmatpush.bf16.msra.mxu0 %v1187
    %1255 = vmatpush.bf16.msra.mxu0 %v1186
    %1256 = vmatpush.bf16.msra.mxu0 %v1185
    %1257 = vmatpush.bf16.msra.mxu0 %v1184
    %1258 = vmatpush.bf16.msra.mxu0 %v1183
    %1259 = vmatpush.bf16.msra.mxu0 %v1182
    %1260 = vmatmul.bf16.gmra.mxu0 %v975
    %v1261 = vpop.f32.mrf.mxu0
    %v1262 = vadd.f32 %v1248, %v1261
    %v1263 = vpop.f32.mrf.mxu0
    %v1264 = vadd.f32 %v1250, %v1263
    %1265 = vdwg.mxu0
    %1266 = vmatpush.bf16.msra.mxu0 %v1197
    %1267 = vmatpush.bf16.msra.mxu0 %v1196
    %1268 = vmatpush.bf16.msra.mxu0 %v1195
    %1269 = vmatpush.bf16.msra.mxu0 %v1194
    %1270 = vmatpush.bf16.msra.mxu0 %v1193
    %1271 = vmatpush.bf16.msra.mxu0 %v1192
    %1272 = vmatpush.bf16.msra.mxu0 %v1191
    %1273 = vmatpush.bf16.msra.mxu0 %v1190
    %1274 = vmatmul.bf16.gmra.mxu0 %v976
    %v1275 = vpop.f32.mrf.mxu0
    %v1276 = vadd.f32 %v1262, %v1275
    %v1277 = vpop.f32.mrf.mxu0
    %v1278 = vadd.f32 %v1264, %v1277
    %1279 = vdwg.mxu0
    %1280 = vmatpush.bf16.msra.mxu0 %v1205
    %1281 = vmatpush.bf16.msra.mxu0 %v1204
    %1282 = vmatpush.bf16.msra.mxu0 %v1203
    %1283 = vmatpush.bf16.msra.mxu0 %v1202
    %1284 = vmatpush.bf16.msra.mxu0 %v1201
    %1285 = vmatpush.bf16.msra.mxu0 %v1200
    %1286 = vmatpush.bf16.msra.mxu0 %v1199
    %1287 = vmatpush.bf16.msra.mxu0 %v1198
    %1288 = vmatmul.bf16.gmra.mxu0 %v977
    %v1289 = vpop.f32.mrf.mxu0
    %v1290 = vadd.f32 %v1276, %v1289
    %v1291 = vpop.f32.mrf.mxu0
    %v1292 = vadd.f32 %v1278, %v1291
    %1293 = vdwg.mxu0
    %v1294 = vpack.c.bf16 %v1290, %v1290
    %v1295 = vpack.c.bf16 %v1292, %v1292
    %1296 = vst [vmem:[#allocation14] sm:$0xf] %v1294
    %1297 = vst [vmem:[#allocation14 + $0x4] sm:$0xf] %v1295
    // Predicated region
    $region74: #{tpu_custom_call.1} parent=1 // pred_check
      _
    $region75: #{tpu_custom_call.1} parent=1 // pred_check_branch
      %1299 = sbr.rel (0) target = $region77
    $region76: #{tpu_custom_call.1} parent=1 // pred_region
      %1301 = vsyncadd [#allocation4], 0
      %s1302 = sshll.u32 [#allocation14], 4
      %s1303 = int_to_ptr.vmem [resolvable:$true] %s1302
      %s1304 = sshll.u32 %s11, 4
      %s1305 = int_to_ptr.hbm [resolvable:$true] %s1304
      %1310 = dma.vmem_to_hbm [thread:$0]  %s1303, 128, %s1305, [#allocation4], 64, 64, 4
    $region77: #{tpu_custom_call.1} parent=1 // pred_fallthru
      _
    // Predicated region
    $region78: #{tpu_custom_call.1} parent=1 // pred_check
      _
    $region79: #{tpu_custom_call.1} parent=1 // pred_check_branch
      %1312 = sbr.rel (0) target = $region81
    $region80: #{tpu_custom_call.1} parent=1 // pred_region
      %1314 = dma.done [#allocation4], 128
    $region81: #{tpu_custom_call.1} parent=1 // pred_fallthru
      _
    %1315 = vsyncpa [#allocation3], 1
    %1316 = vsyncpa [#allocation6], 1
    %1317 = vsyncpa [#allocation9], 1
    %1318 = vsyncpa [#allocation12], 1
    %1319 = vsyncpa [#allocation4], 1

</llo_original>
